<compile_context>
chip_gen: v6e
topology: v6e:2x2x1
jax: 0.10.0
libtpu: 0.0.40
codegen_flags: <defaults>
</compile_context>

<pallas_src>
import functools

import jax
import jax.numpy as jnp
from jax.experimental import pallas as pl
from jax.experimental.pallas import tpu as pltpu  # noqa: F401  (not needed by the gridless fused kernel)


def _round_up(x, m):
    return (x + m - 1) // m * m


def gcn_fused_kernel(a_ref, xw1_ref, b1_ref, g_ref, be_ref, w2_ref, b2_ref,
                     o_ref, *, n_real, eps):
    """out = (A @ relu(BN(A @ XW1 + b1))) @ W2 + b2, fully VMEM-resident."""
    a = a_ref[...]                                                    # (Np, Np) bf16

    # ---- GCNConv #1: H = A @ (X W1) + b1  (bf16 MXU, f32 accumulation) ----
    h = jnp.dot(a, xw1_ref[...], preferred_element_type=jnp.float32) + b1_ref[...]

    # ---- BatchNorm(64, track_running_stats=False): masked two-pass batch stats ----
    row = jax.lax.broadcasted_iota(jnp.int32, h.shape, 0)
    valid = row < n_real                                              # mask padded rows
    inv_n = 1.0 / n_real
    mean = jnp.sum(jnp.where(valid, h, 0.0), axis=0, keepdims=True) * inv_n
    cen = jnp.where(valid, h - mean, 0.0)
    var = jnp.sum(cen * cen, axis=0, keepdims=True) * inv_n           # biased, as in torch BN
    scale = g_ref[...] * jax.lax.rsqrt(var + eps)
    shift = be_ref[...] - mean * scale

    # ---- ReLU (+ Dropout as identity) and bf16 pack, applied exactly once ----
    # TODO(synk): nn.Dropout(p=0.5) is identity in eval/inference mode; training-mode
    # stochastic dropout (pltpu.prng_*) is intentionally omitted.
    hn = jnp.maximum(h * scale + shift, 0.0).astype(jnp.bfloat16)

    # ---- GCNConv #2: out = (A @ Hn) @ W2 + b2  (all-bf16 MXU, f32 accumulation) ----
    ah = jnp.dot(a, hn, preferred_element_type=jnp.float32)
    o_ref[...] = jnp.dot(ah.astype(jnp.bfloat16), w2_ref[...],
                         preferred_element_type=jnp.float32) + b2_ref[...]


def gcn_embedding(a_norm, x, w1, b1, gamma, beta, w2, b2, *, eps=1e-5):
    n = x.shape[0]
    hid = w1.shape[1]
    c_out = w2.shape[1]

    f32, bf16 = jnp.float32, jnp.bfloat16

    # 256-aligned node dim fills the v6e/v7x MXU (and is 2x the native v5e tile);
    # feature dims padded to 128 lanes.
    n_pad = _round_up(n, 256)
    hid_p = _round_up(hid, 128)
    out_p = _round_up(c_out, 128)

    # Fold W1 into X outside the kernel (trivial (n, c_in) @ (c_in, hid) matmul in XLA).
    xw1 = (x.astype(f32) @ w1).astype(bf16)

    # Zero-pad to lane-dense, MXU-friendly shapes. Padding is inert by construction:
    # padded A rows/cols are 0 and padded weight/bias/affine entries are 0, and the
    # in-kernel BN statistics mask padded rows.
    a_p = jnp.zeros((n_pad, n_pad), bf16).at[:n, :n].set(a_norm.astype(bf16))
    xw1_p = jnp.zeros((n_pad, hid_p), bf16).at[:n, :hid].set(xw1)
    b1_p = jnp.zeros((1, hid_p), f32).at[:, :hid].set(b1.reshape(1, -1))
    g_p = jnp.zeros((1, hid_p), f32).at[:, :hid].set(gamma.reshape(1, -1))
    be_p = jnp.zeros((1, hid_p), f32).at[:, :hid].set(beta.reshape(1, -1))
    w2_p = jnp.zeros((hid_p, out_p), bf16).at[:hid, :c_out].set(w2.astype(bf16))
    b2_p = jnp.zeros((1, out_p), f32).at[:, :c_out].set(b2.reshape(1, -1))

    out_pad = pl.pallas_call(
        functools.partial(gcn_fused_kernel, n_real=n, eps=eps),
        out_shape=jax.ShapeDtypeStruct((n_pad, out_p), f32),
        grid=(1,),
        in_specs=[
            pl.BlockSpec((n_pad, n_pad), lambda i: (0, 0)),   # A_hat (bf16, resident)
            pl.BlockSpec((n_pad, hid_p), lambda i: (0, 0)),   # X @ W1 (bf16, resident)
            pl.BlockSpec((1, hid_p), lambda i: (0, 0)),       # b1
            pl.BlockSpec((1, hid_p), lambda i: (0, 0)),       # gamma
            pl.BlockSpec((1, hid_p), lambda i: (0, 0)),       # beta
            pl.BlockSpec((hid_p, out_p), lambda i: (0, 0)),   # W2 (bf16, resident)
            pl.BlockSpec((1, out_p), lambda i: (0, 0)),       # b2
        ],
        out_specs=pl.BlockSpec((n_pad, out_p), lambda i: (0, 0)),
    )(a_p, xw1_p, b1_p, g_p, be_p, w2_p, b2_p)

    return out_pad[:n, :c_out]


def build_normalized_adjacency(edge_index, edge_weight, num_nodes):
    """Dense D^-1/2 (A + I) D^-1/2 with A[dst, src] = w (message src -> dst)."""
    src = edge_index[0]
    dst = edge_index[1]
    a = jnp.zeros((num_nodes, num_nodes), jnp.float32)
    a = a.at[dst, src].add(edge_weight)
    a = a + jnp.eye(num_nodes, dtype=jnp.float32)        # self loops, weight 1
    deg = jnp.sum(a, axis=1)
    dinv = jnp.where(deg > 0, jax.lax.rsqrt(deg), 0.0)
    return dinv[:, None] * a * dinv[None, :]


def gcn_reference(a_norm, x, w1, b1, gamma, beta, w2, b2, eps=1e-5):
    """Pure-JAX reference of the module forward, mirroring the kernel's bf16 casts."""
    f32 = jnp.float32
    a = a_norm.astype(jnp.bfloat16).astype(f32)
    xw1 = (x @ w1).astype(jnp.bfloat16).astype(f32)
    h = a @ xw1 + b1.reshape(1, -1)
    mean = jnp.mean(h, axis=0, keepdims=True)
    var = jnp.mean((h - mean) ** 2, axis=0, keepdims=True)
    hn = (h - mean) * jax.lax.rsqrt(var + eps) * gamma.reshape(1, -1) + beta.reshape(1, -1)
    hn = jnp.maximum(hn, 0.0).astype(jnp.bfloat16).astype(f32)
    ah = (a @ hn).astype(jnp.bfloat16).astype(f32)
    return ah @ w2.astype(jnp.bfloat16).astype(f32) + b2.reshape(1, -1)


if __name__ == "__main__":
    N = 160          # graph nodes (padded to 256 inside the wrapper)
    IN_CH = 8        # in_channels
    HID = 64         # GCNConv hidden size (fixed to 64 in the module)
    OUT_CH = 32      # out_channels
    N_EDGES = 640

    key = jax.random.PRNGKey(0)
    kx, ke, kw, kw1, kw2 = jax.random.split(key, 5)

    # Node features and a deterministic random sparse weighted graph
    x = jax.random.normal(kx, (N, IN_CH), jnp.float32)
    edge_index = jax.random.randint(ke, (2, N_EDGES), 0, N, dtype=jnp.int32)
    edge_weight = jax.random.uniform(kw, (N_EDGES,), jnp.float32, 0.1, 1.0)
    a_norm = build_normalized_adjacency(edge_index, edge_weight, N)

    # Parameters (Glorot-style GCNConv weights, zero biases, fresh BatchNorm affine)
    w1 = jax.random.normal(kw1, (IN_CH, HID), jnp.float32) * (2.0 / (IN_CH + HID)) ** 0.5
    b1 = jnp.zeros((HID,), jnp.float32)
    gamma = jnp.ones((HID,), jnp.float32)
    beta = jnp.zeros((HID,), jnp.float32)
    w2 = jax.random.normal(kw2, (HID, OUT_CH), jnp.float32) * (2.0 / (HID + OUT_CH)) ** 0.5
    b2 = jnp.zeros((OUT_CH,), jnp.float32)

    out = jax.jit(gcn_embedding)(a_norm, x, w1, b1, gamma, beta, w2, b2)
    out = jax.block_until_ready(out)

    ref = gcn_reference(a_norm, x, w1, b1, gamma, beta, w2, b2)
    err = float(jnp.max(jnp.abs(out - ref)))

    assert out.shape == (N, OUT_CH)
    assert bool(jnp.all(jnp.isfinite(out)))
    assert err < 0.15, f"max abs diff vs reference too large: {err}"
    print("KERNEL_OK")
</pallas_src>

<mosaic_0001>
module attributes {stable_mosaic.version = 11 : i64} {
  func.func @gcn_fused_kernel(%arg0: i32, %arg1: memref<256x256xbf16, #tpu.memory_space<vmem>>, %arg2: memref<256x128xbf16, #tpu.memory_space<vmem>>, %arg3: memref<1x128xf32, #tpu.memory_space<vmem>>, %arg4: memref<1x128xf32, #tpu.memory_space<vmem>>, %arg5: memref<1x128xf32, #tpu.memory_space<vmem>>, %arg6: memref<128x128xbf16, #tpu.memory_space<vmem>>, %arg7: memref<1x128xf32, #tpu.memory_space<vmem>>, %arg8: memref<256x128xf32, #tpu.memory_space<vmem>>) attributes {dimension_semantics = [#tpu.dimension_semantics<arbitrary>], iteration_bounds = array<i64: 1>, scalar_prefetch = 0 : i64, scratch_operands = 0 : i64, tpu.core_type = #tpu.core_type<tc>, window_params = [{pipeline_mode = #tpu.pipeline_mode<synchronous>, transform_indices = @transform_0, window_bounds = array<i64: 256, 256>}, {pipeline_mode = #tpu.pipeline_mode<synchronous>, transform_indices = @transform_1, window_bounds = array<i64: 256, 128>}, {pipeline_mode = #tpu.pipeline_mode<synchronous>, transform_indices = @transform_2, window_bounds = array<i64: 1, 128>}, {pipeline_mode = #tpu.pipeline_mode<synchronous>, transform_indices = @transform_3, window_bounds = array<i64: 1, 128>}, {pipeline_mode = #tpu.pipeline_mode<synchronous>, transform_indices = @transform_4, window_bounds = array<i64: 1, 128>}, {pipeline_mode = #tpu.pipeline_mode<synchronous>, transform_indices = @transform_5, window_bounds = array<i64: 128, 128>}, {pipeline_mode = #tpu.pipeline_mode<synchronous>, transform_indices = @transform_6, window_bounds = array<i64: 1, 128>}, {pipeline_mode = #tpu.pipeline_mode<synchronous>, transform_indices = @transform_7, window_bounds = array<i64: 256, 128>}]} {
    %c0 = arith.constant 0 : index
    %c0_0 = arith.constant 0 : index
    %0 = vector.load %arg1[%c0, %c0_0] : memref<256x256xbf16, #tpu.memory_space<vmem>>, vector<256x256xbf16>
    %c0_1 = arith.constant 0 : index
    %c0_2 = arith.constant 0 : index
    %1 = vector.load %arg2[%c0_1, %c0_2] : memref<256x128xbf16, #tpu.memory_space<vmem>>, vector<256x128xbf16>
    %cst = arith.constant dense<0.000000e+00> : vector<256x128xf32>
    %2 = tpu.matmul %0, %1, %cst {dimension_numbers = #tpu.dot_dimension_numbers<[1], [0], [0], [1], [0, 0, 1, 1], [], []>} : vector<256x256xbf16>, vector<256x128xbf16>, vector<256x128xf32> -> vector<256x128xf32>
    %c0_3 = arith.constant 0 : index
    %c0_4 = arith.constant 0 : index
    %3 = vector.load %arg3[%c0_3, %c0_4] : memref<1x128xf32, #tpu.memory_space<vmem>>, vector<1x128xf32>
    %4 = vector.broadcast %3 : vector<1x128xf32> to vector<256x128xf32>
    %5 = arith.addf %2, %4 : vector<256x128xf32>
    %6 = tpu.iota {dimensions = array<i32: 0>} : vector<256x128xi32>
    %c160_i32 = arith.constant 160 : i32
    %7 = vector.broadcast %c160_i32 : i32 to vector<256x128xi32>
    %8 = arith.cmpi slt, %6, %7 : vector<256x128xi32>
    %cst_5 = arith.constant 0.000000e+00 : f32
    %9 = vector.broadcast %cst_5 : f32 to vector<256x128xf32>
    %10 = arith.select %8, %5, %9 : vector<256x128xi1>, vector<256x128xf32>
    %cst_6 = arith.constant dense<0.000000e+00> : vector<128xf32>
    %11 = vector.multi_reduction <add>, %10, %cst_6 [0] : vector<256x128xf32> to vector<128xf32>
    %12 = vector.shape_cast %11 : vector<128xf32> to vector<1x128xf32>
    %cst_7 = arith.constant 6.250000e-03 : f32
    %13 = vector.broadcast %cst_7 : f32 to vector<1x128xf32>
    %14 = arith.mulf %12, %13 : vector<1x128xf32>
    %15 = vector.broadcast %14 : vector<1x128xf32> to vector<256x128xf32>
    %16 = arith.subf %5, %15 : vector<256x128xf32>
    %cst_8 = arith.constant 0.000000e+00 : f32
    %17 = vector.broadcast %cst_8 : f32 to vector<256x128xf32>
    %18 = arith.select %8, %16, %17 : vector<256x128xi1>, vector<256x128xf32>
    %19 = arith.mulf %18, %18 : vector<256x128xf32>
    %cst_9 = arith.constant dense<0.000000e+00> : vector<128xf32>
    %20 = vector.multi_reduction <add>, %19, %cst_9 [0] : vector<256x128xf32> to vector<128xf32>
    %21 = vector.shape_cast %20 : vector<128xf32> to vector<1x128xf32>
    %cst_10 = arith.constant 6.250000e-03 : f32
    %22 = vector.broadcast %cst_10 : f32 to vector<1x128xf32>
    %23 = arith.mulf %21, %22 : vector<1x128xf32>
    %c0_11 = arith.constant 0 : index
    %c0_12 = arith.constant 0 : index
    %24 = vector.load %arg4[%c0_11, %c0_12] : memref<1x128xf32, #tpu.memory_space<vmem>>, vector<1x128xf32>
    %cst_13 = arith.constant 9.99999974E-6 : f32
    %25 = vector.broadcast %cst_13 : f32 to vector<1x128xf32>
    %26 = arith.addf %23, %25 : vector<1x128xf32>
    %27 = math.rsqrt %26 : vector<1x128xf32>
    %28 = arith.mulf %24, %27 : vector<1x128xf32>
    %c0_14 = arith.constant 0 : index
    %c0_15 = arith.constant 0 : index
    %29 = vector.load %arg5[%c0_14, %c0_15] : memref<1x128xf32, #tpu.memory_space<vmem>>, vector<1x128xf32>
    %30 = arith.mulf %14, %28 : vector<1x128xf32>
    %31 = arith.subf %29, %30 : vector<1x128xf32>
    %32 = vector.broadcast %28 : vector<1x128xf32> to vector<256x128xf32>
    %33 = arith.mulf %5, %32 : vector<256x128xf32>
    %34 = vector.broadcast %31 : vector<1x128xf32> to vector<256x128xf32>
    %35 = arith.addf %33, %34 : vector<256x128xf32>
    %cst_16 = arith.constant 0.000000e+00 : f32
    %36 = vector.broadcast %cst_16 : f32 to vector<256x128xf32>
    %37 = arith.maximumf %35, %36 : vector<256x128xf32>
    %38 = arith.truncf %37 : vector<256x128xf32> to vector<256x128xbf16>
    %cst_17 = arith.constant dense<0.000000e+00> : vector<256x128xf32>
    %39 = tpu.matmul %0, %38, %cst_17 {dimension_numbers = #tpu.dot_dimension_numbers<[1], [0], [0], [1], [0, 0, 1, 1], [], []>} : vector<256x256xbf16>, vector<256x128xbf16>, vector<256x128xf32> -> vector<256x128xf32>
    %40 = arith.truncf %39 : vector<256x128xf32> to vector<256x128xbf16>
    %c0_18 = arith.constant 0 : index
    %c0_19 = arith.constant 0 : index
    %41 = vector.load %arg6[%c0_18, %c0_19] : memref<128x128xbf16, #tpu.memory_space<vmem>>, vector<128x128xbf16>
    %cst_20 = arith.constant dense<0.000000e+00> : vector<256x128xf32>
    %42 = tpu.matmul %40, %41, %cst_20 {dimension_numbers = #tpu.dot_dimension_numbers<[1], [0], [0], [1], [0, 0, 1, 1], [], []>} : vector<256x128xbf16>, vector<128x128xbf16>, vector<256x128xf32> -> vector<256x128xf32>
    %c0_21 = arith.constant 0 : index
    %c0_22 = arith.constant 0 : index
    %43 = vector.load %arg7[%c0_21, %c0_22] : memref<1x128xf32, #tpu.memory_space<vmem>>, vector<1x128xf32>
    %44 = vector.broadcast %43 : vector<1x128xf32> to vector<256x128xf32>
    %45 = arith.addf %42, %44 : vector<256x128xf32>
    %c0_23 = arith.constant 0 : index
    %c0_24 = arith.constant 0 : index
    %46 = vector.load %arg8[%c0_23, %c0_24] : memref<256x128xf32, #tpu.memory_space<vmem>>, vector<256x128xf32>
    tpu.vector_store %arg8[%c0_23, %c0_24], %45 {strides = array<i32>} : memref<256x128xf32, #tpu.memory_space<vmem>>, vector<256x128xf32>,
    return
  }
  func.func @transform_0(%arg0: i32) -> (i32, i32) {
    %c0_i32 = arith.constant 0 : i32
    %c0_i32_0 = arith.constant 0 : i32
    %c0_i32_1 = arith.constant 0 : i32
    return %c0_i32, %c0_i32_0 : i32, i32
  }
  func.func @transform_1(%arg0: i32) -> (i32, i32) {
    %c0_i32 = arith.constant 0 : i32
    %c0_i32_0 = arith.constant 0 : i32
    %c0_i32_1 = arith.constant 0 : i32
    return %c0_i32, %c0_i32_0 : i32, i32
  }
  func.func @transform_2(%arg0: i32) -> (i32, i32) {
    %c0_i32 = arith.constant 0 : i32
    %c0_i32_0 = arith.constant 0 : i32
    %c0_i32_1 = arith.constant 0 : i32
    return %c0_i32, %c0_i32_0 : i32, i32
  }
  func.func @transform_3(%arg0: i32) -> (i32, i32) {
    %c0_i32 = arith.constant 0 : i32
    %c0_i32_0 = arith.constant 0 : i32
    %c0_i32_1 = arith.constant 0 : i32
    return %c0_i32, %c0_i32_0 : i32, i32
  }
  func.func @transform_4(%arg0: i32) -> (i32, i32) {
    %c0_i32 = arith.constant 0 : i32
    %c0_i32_0 = arith.constant 0 : i32
    %c0_i32_1 = arith.constant 0 : i32
    return %c0_i32, %c0_i32_0 : i32, i32
  }
  func.func @transform_5(%arg0: i32) -> (i32, i32) {
    %c0_i32 = arith.constant 0 : i32
    %c0_i32_0 = arith.constant 0 : i32
    %c0_i32_1 = arith.constant 0 : i32
    return %c0_i32, %c0_i32_0 : i32, i32
  }
  func.func @transform_6(%arg0: i32) -> (i32, i32) {
    %c0_i32 = arith.constant 0 : i32
    %c0_i32_0 = arith.constant 0 : i32
    %c0_i32_1 = arith.constant 0 : i32
    return %c0_i32, %c0_i32_0 : i32, i32
  }
  func.func @transform_7(%arg0: i32) -> (i32, i32) {
    %c0_i32 = arith.constant 0 : i32
    %c0_i32_0 = arith.constant 0 : i32
    %c0_i32_1 = arith.constant 0 : i32
    return %c0_i32, %c0_i32_0 : i32, i32
  }
}

</mosaic_0001>

<llo_original>
// kernel: gcn_embedding.1
$region0: #{gcn_embedding.1}
  #allocation0 [shape = 'u32[]', space=smem, size = 0x4, offset = 0x4, fixed_abs, tag = 'smem constant byte address 0x4 - core index']
  #allocation1 [shape = 'u32[144,128]{1,0:T(1,128)}', space=vmem, size = 0x12000, scoped, tag = 'internal scratch']
  %s0 = inlined_call_operand.vmem [shape: bf16[256,256], index: 0, kind: input, shape index: {}]
  %s1 = inlined_call_operand.vmem [shape: bf16[256,128], index: 1, kind: input, shape index: {}]
  %s2 = inlined_call_operand.vmem [shape: f32[1,128], index: 2, kind: input, shape index: {}]
  %s3 = inlined_call_operand.vmem [shape: f32[1,128], index: 3, kind: input, shape index: {}]
  %s4 = inlined_call_operand.vmem [shape: f32[1,128], index: 4, kind: input, shape index: {}]
  %s5 = inlined_call_operand.vmem [shape: bf16[128,128], index: 5, kind: input, shape index: {}]
  %s6 = inlined_call_operand.vmem [shape: f32[1,128], index: 6, kind: input, shape index: {}]
  %s7 = inlined_call_operand.vmem [shape: f32[256,128], index: 7, kind: output, shape index: {}]
  %s8 = sld [smem:[#allocation0]]
  $region38: #{gcn_embedding.1} parent=0
    _
  %s10 = ssub.s32 1, %s8
  %s11 = scalar_select 0, %s10, %s8
  // Predicated region
  $region2: #{gcn_embedding.1} parent=0 // pred_check
    _
  $region3: #{gcn_embedding.1} parent=0 // pred_check_branch
    %13 = sbr.rel (0) target = $region5
  $region4: #{gcn_embedding.1} parent=0 // pred_region
    _
  $region5: #{gcn_embedding.1} parent=0 // pred_fallthru
    _
  // Predicated region
  $region6: #{gcn_embedding.1} parent=0 // pred_check
    _
  $region7: #{gcn_embedding.1} parent=0 // pred_check_branch
    %15 = sbr.rel (0) target = $region9
  $region8: #{gcn_embedding.1} parent=0 // pred_region
    _
  $region9: #{gcn_embedding.1} parent=0 // pred_fallthru
    _
  // Predicated region
  $region10: #{gcn_embedding.1} parent=0 // pred_check
    _
  $region11: #{gcn_embedding.1} parent=0 // pred_check_branch
    %17 = sbr.rel (0) target = $region13
  $region12: #{gcn_embedding.1} parent=0 // pred_region
    _
  $region13: #{gcn_embedding.1} parent=0 // pred_fallthru
    _
  // Predicated region
  $region14: #{gcn_embedding.1} parent=0 // pred_check
    _
  $region15: #{gcn_embedding.1} parent=0 // pred_check_branch
    %19 = sbr.rel (0) target = $region17
  $region16: #{gcn_embedding.1} parent=0 // pred_region
    _
  $region17: #{gcn_embedding.1} parent=0 // pred_fallthru
    _
  // Predicated region
  $region18: #{gcn_embedding.1} parent=0 // pred_check
    _
  $region19: #{gcn_embedding.1} parent=0 // pred_check_branch
    %21 = sbr.rel (0) target = $region21
  $region20: #{gcn_embedding.1} parent=0 // pred_region
    _
  $region21: #{gcn_embedding.1} parent=0 // pred_fallthru
    _
  // Predicated region
  $region22: #{gcn_embedding.1} parent=0 // pred_check
    _
  $region23: #{gcn_embedding.1} parent=0 // pred_check_branch
    %23 = sbr.rel (0) target = $region25
  $region24: #{gcn_embedding.1} parent=0 // pred_region
    _
  $region25: #{gcn_embedding.1} parent=0 // pred_fallthru
    _
  // Predicated region
  $region26: #{gcn_embedding.1} parent=0 // pred_check
    _
  $region27: #{gcn_embedding.1} parent=0 // pred_check_branch
    %25 = sbr.rel (0) target = $region29
  $region28: #{gcn_embedding.1} parent=0 // pred_region
    _
  $region29: #{gcn_embedding.1} parent=0 // pred_fallthru
    _
  %v27 = vld [vmem:[%s0] sm:$0xff]
  %v28 = vld [vmem:[%s0 + $0x8] sm:$0xff]
  %v29 = vld [vmem:[%s0 + $0x10] sm:$0xff]
  %v30 = vld [vmem:[%s0 + $0x18] sm:$0xff]
  %v31 = vld [vmem:[%s0 + $0x20] sm:$0xff]
  %v32 = vld [vmem:[%s0 + $0x28] sm:$0xff]
  %v33 = vld [vmem:[%s0 + $0x30] sm:$0xff]
  %v34 = vld [vmem:[%s0 + $0x38] sm:$0xff]
  %v35 = vld [vmem:[%s0 + $0x40] sm:$0xff]
  %v36 = vld [vmem:[%s0 + $0x48] sm:$0xff]
  %v37 = vld [vmem:[%s0 + $0x50] sm:$0xff]
  %v38 = vld [vmem:[%s0 + $0x58] sm:$0xff]
  %v39 = vld [vmem:[%s0 + $0x60] sm:$0xff]
  %v40 = vld [vmem:[%s0 + $0x68] sm:$0xff]
  %v41 = vld [vmem:[%s0 + $0x70] sm:$0xff]
  %v42 = vld [vmem:[%s0 + $0x78] sm:$0xff]
  %v43 = vld [vmem:[%s0 + $0x80] sm:$0xff]
  %v44 = vld [vmem:[%s0 + $0x88] sm:$0xff]
  %v45 = vld [vmem:[%s0 + $0x90] sm:$0xff]
  %v46 = vld [vmem:[%s0 + $0x98] sm:$0xff]
  %v47 = vld [vmem:[%s0 + $0xa0] sm:$0xff]
  %v48 = vld [vmem:[%s0 + $0xa8] sm:$0xff]
  %v49 = vld [vmem:[%s0 + $0xb0] sm:$0xff]
  %v50 = vld [vmem:[%s0 + $0xb8] sm:$0xff]
  %v51 = vld [vmem:[%s0 + $0xc0] sm:$0xff]
  %v52 = vld [vmem:[%s0 + $0xc8] sm:$0xff]
  %v53 = vld [vmem:[%s0 + $0xd0] sm:$0xff]
  %v54 = vld [vmem:[%s0 + $0xd8] sm:$0xff]
  %v55 = vld [vmem:[%s0 + $0xe0] sm:$0xff]
  %v56 = vld [vmem:[%s0 + $0xe8] sm:$0xff]
  %v57 = vld [vmem:[%s0 + $0xf0] sm:$0xff]
  %v58 = vld [vmem:[%s0 + $0xf8] sm:$0xff]
  %v59 = vld [vmem:[%s1] sm:$0xf]
  %v60 = vld [vmem:[%s1 + $0x4] sm:$0xf]
  %v61 = vld [vmem:[%s1 + $0x8] sm:$0xf]
  %v62 = vld [vmem:[%s1 + $0xc] sm:$0xf]
  %v63 = vld [vmem:[%s1 + $0x10] sm:$0xf]
  %v64 = vld [vmem:[%s1 + $0x14] sm:$0xf]
  %v65 = vld [vmem:[%s1 + $0x18] sm:$0xf]
  %v66 = vld [vmem:[%s1 + $0x1c] sm:$0xf]
  %v67 = vld [vmem:[%s1 + $0x20] sm:$0xf]
  %v68 = vld [vmem:[%s1 + $0x24] sm:$0xf]
  %v69 = vld [vmem:[%s1 + $0x28] sm:$0xf]
  %v70 = vld [vmem:[%s1 + $0x2c] sm:$0xf]
  %v71 = vld [vmem:[%s1 + $0x30] sm:$0xf]
  %v72 = vld [vmem:[%s1 + $0x34] sm:$0xf]
  %v73 = vld [vmem:[%s1 + $0x38] sm:$0xf]
  %v74 = vld [vmem:[%s1 + $0x3c] sm:$0xf]
  %v75 = vld [vmem:[%s1 + $0x40] sm:$0xf]
  %v76 = vld [vmem:[%s1 + $0x44] sm:$0xf]
  %v77 = vld [vmem:[%s1 + $0x48] sm:$0xf]
  %v78 = vld [vmem:[%s1 + $0x4c] sm:$0xf]
  %v79 = vld [vmem:[%s1 + $0x50] sm:$0xf]
  %v80 = vld [vmem:[%s1 + $0x54] sm:$0xf]
  %v81 = vld [vmem:[%s1 + $0x58] sm:$0xf]
  %v82 = vld [vmem:[%s1 + $0x5c] sm:$0xf]
  %v83 = vld [vmem:[%s1 + $0x60] sm:$0xf]
  %v84 = vld [vmem:[%s1 + $0x64] sm:$0xf]
  %v85 = vld [vmem:[%s1 + $0x68] sm:$0xf]
  %v86 = vld [vmem:[%s1 + $0x6c] sm:$0xf]
  %v87 = vld [vmem:[%s1 + $0x70] sm:$0xf]
  %v88 = vld [vmem:[%s1 + $0x74] sm:$0xf]
  %v89 = vld [vmem:[%s1 + $0x78] sm:$0xf]
  %v90 = vld [vmem:[%s1 + $0x7c] sm:$0xf]
  %v91 = vld [vmem:[%s2] sm:$0x1]
  %v93 = vlaneseq
  %v94 = vshrl.u32 %v93, 7
  %v95 = vsub.s32 0, %v94
  %v96 = vrot.slane %v91, %v95
  %v130 = vunpack.c.l.b16 %v27
  %v131 = vunpack.c.h.b16 %v27
  %v132 = vunpack.c.l.b16 %v28
  %v133 = vunpack.c.h.b16 %v28
  %v134 = vunpack.c.l.b16 %v29
  %v135 = vunpack.c.h.b16 %v29
  %v136 = vunpack.c.l.b16 %v30
  %v137 = vunpack.c.h.b16 %v30
  %v138 = vunpack.c.l.b16 %v31
  %v139 = vunpack.c.h.b16 %v31
  %v140 = vunpack.c.l.b16 %v32
  %v141 = vunpack.c.h.b16 %v32
  %v142 = vunpack.c.l.b16 %v33
  %v143 = vunpack.c.h.b16 %v33
  %v144 = vunpack.c.l.b16 %v34
  %v145 = vunpack.c.h.b16 %v34
  %v146 = vunpack.c.l.b16 %v35
  %v147 = vunpack.c.h.b16 %v35
  %v148 = vunpack.c.l.b16 %v36
  %v149 = vunpack.c.h.b16 %v36
  %v150 = vunpack.c.l.b16 %v37
  %v151 = vunpack.c.h.b16 %v37
  %v152 = vunpack.c.l.b16 %v38
  %v153 = vunpack.c.h.b16 %v38
  %v154 = vunpack.c.l.b16 %v39
  %v155 = vunpack.c.h.b16 %v39
  %v156 = vunpack.c.l.b16 %v40
  %v157 = vunpack.c.h.b16 %v40
  %v158 = vunpack.c.l.b16 %v41
  %v159 = vunpack.c.h.b16 %v41
  %v160 = vunpack.c.l.b16 %v42
  %v161 = vunpack.c.h.b16 %v42
  %v162 = vunpack.c.l.b16 %v43
  %v163 = vunpack.c.h.b16 %v43
  %v164 = vunpack.c.l.b16 %v44
  %v165 = vunpack.c.h.b16 %v44
  %v166 = vunpack.c.l.b16 %v45
  %v167 = vunpack.c.h.b16 %v45
  %v168 = vunpack.c.l.b16 %v46
  %v169 = vunpack.c.h.b16 %v46
  %v170 = vunpack.c.l.b16 %v47
  %v171 = vunpack.c.h.b16 %v47
  %v172 = vunpack.c.l.b16 %v48
  %v173 = vunpack.c.h.b16 %v48
  %v174 = vunpack.c.l.b16 %v49
  %v175 = vunpack.c.h.b16 %v49
  %v176 = vunpack.c.l.b16 %v50
  %v177 = vunpack.c.h.b16 %v50
  %v178 = vunpack.c.l.b16 %v51
  %v179 = vunpack.c.h.b16 %v51
  %v180 = vunpack.c.l.b16 %v52
  %v181 = vunpack.c.h.b16 %v52
  %v182 = vunpack.c.l.b16 %v53
  %v183 = vunpack.c.h.b16 %v53
  %v184 = vunpack.c.l.b16 %v54
  %v185 = vunpack.c.h.b16 %v54
  %v186 = vunpack.c.l.b16 %v55
  %v187 = vunpack.c.h.b16 %v55
  %v188 = vunpack.c.l.b16 %v56
  %v189 = vunpack.c.h.b16 %v56
  %v190 = vunpack.c.l.b16 %v57
  %v191 = vunpack.c.h.b16 %v57
  %v192 = vunpack.c.l.b16 %v58
  %v193 = vunpack.c.h.b16 %v58
  %v194 = vpack.c.b16 %v132, %v130
  %v195 = vpack.c.b16 %v133, %v131
  %v196 = vpack.c.b16 %v136, %v134
  %v197 = vpack.c.b16 %v137, %v135
  %v198 = vpack.c.b16 %v140, %v138
  %v199 = vpack.c.b16 %v141, %v139
  %v200 = vpack.c.b16 %v144, %v142
  %v201 = vpack.c.b16 %v145, %v143
  %v202 = vpack.c.b16 %v148, %v146
  %v203 = vpack.c.b16 %v149, %v147
  %v204 = vpack.c.b16 %v152, %v150
  %v205 = vpack.c.b16 %v153, %v151
  %v206 = vpack.c.b16 %v156, %v154
  %v207 = vpack.c.b16 %v157, %v155
  %v208 = vpack.c.b16 %v160, %v158
  %v209 = vpack.c.b16 %v161, %v159
  %v210 = vpack.c.b16 %v164, %v162
  %v211 = vpack.c.b16 %v165, %v163
  %v212 = vpack.c.b16 %v168, %v166
  %v213 = vpack.c.b16 %v169, %v167
  %v214 = vpack.c.b16 %v172, %v170
  %v215 = vpack.c.b16 %v173, %v171
  %v216 = vpack.c.b16 %v176, %v174
  %v217 = vpack.c.b16 %v177, %v175
  %v218 = vpack.c.b16 %v180, %v178
  %v219 = vpack.c.b16 %v181, %v179
  %v220 = vpack.c.b16 %v184, %v182
  %v221 = vpack.c.b16 %v185, %v183
  %v222 = vpack.c.b16 %v188, %v186
  %v223 = vpack.c.b16 %v189, %v187
  %v224 = vpack.c.b16 %v192, %v190
  %v225 = vpack.c.b16 %v193, %v191
  %v290 = vunpack.c.l.b16 %v59
  %v291 = vunpack.c.l.b16 %v60
  %v292 = vunpack.c.l.b16 %v61
  %v293 = vunpack.c.l.b16 %v62
  %v294 = vunpack.c.l.b16 %v63
  %v295 = vunpack.c.l.b16 %v64
  %v296 = vunpack.c.l.b16 %v65
  %v297 = vunpack.c.l.b16 %v66
  %v298 = vunpack.c.l.b16 %v67
  %v299 = vunpack.c.l.b16 %v68
  %v300 = vunpack.c.l.b16 %v69
  %v301 = vunpack.c.l.b16 %v70
  %v302 = vunpack.c.l.b16 %v71
  %v303 = vunpack.c.l.b16 %v72
  %v304 = vunpack.c.l.b16 %v73
  %v305 = vunpack.c.l.b16 %v74
  %v306 = vunpack.c.l.b16 %v75
  %v307 = vunpack.c.l.b16 %v76
  %v308 = vunpack.c.l.b16 %v77
  %v309 = vunpack.c.l.b16 %v78
  %v310 = vunpack.c.l.b16 %v79
  %v311 = vunpack.c.l.b16 %v80
  %v312 = vunpack.c.l.b16 %v81
  %v313 = vunpack.c.l.b16 %v82
  %v314 = vunpack.c.l.b16 %v83
  %v315 = vunpack.c.l.b16 %v84
  %v316 = vunpack.c.l.b16 %v85
  %v317 = vunpack.c.l.b16 %v86
  %v318 = vunpack.c.l.b16 %v87
  %v319 = vunpack.c.l.b16 %v88
  %v320 = vunpack.c.l.b16 %v89
  %v321 = vunpack.c.l.b16 %v90
  %v322 = vpack.c.b16 %v291, %v290
  %v323 = vpack.c.b16 %v293, %v292
  %v324 = vpack.c.b16 %v295, %v294
  %v325 = vpack.c.b16 %v297, %v296
  %v326 = vpack.c.b16 %v299, %v298
  %v327 = vpack.c.b16 %v301, %v300
  %v328 = vpack.c.b16 %v303, %v302
  %v329 = vpack.c.b16 %v305, %v304
  %v330 = vpack.c.b16 %v307, %v306
  %v331 = vpack.c.b16 %v309, %v308
  %v332 = vpack.c.b16 %v311, %v310
  %v333 = vpack.c.b16 %v313, %v312
  %v334 = vpack.c.b16 %v315, %v314
  %v335 = vpack.c.b16 %v317, %v316
  %v336 = vpack.c.b16 %v319, %v318
  %v337 = vpack.c.b16 %v321, %v320
  %354 = vmatprep.subr.bf16.mxu0 0
  %355 = vmatpush1.bf16.msra.mxu0 %v329
  %356 = vmatprep.subr.bf16.mxu0 0
  %357 = vmatpush1.bf16.msra.mxu0 %v328
  %358 = vmatprep.subr.bf16.mxu0 0
  %359 = vmatpush1.bf16.msra.mxu0 %v327
  %360 = vmatprep.subr.bf16.mxu0 0
  %361 = vmatpush1.bf16.msra.mxu0 %v326
  %362 = vmatprep.subr.bf16.mxu0 0
  %363 = vmatpush1.bf16.msra.mxu0 %v325
  %364 = vmatprep.subr.bf16.mxu0 0
  %365 = vmatpush1.bf16.msra.mxu0 %v324
  %366 = vmatprep.subr.bf16.mxu0 0
  %367 = vmatpush1.bf16.msra.mxu0 %v323
  %368 = vmatprep.subr.bf16.mxu0 0
  %369 = vmatpush1.bf16.msra.mxu0 %v322
  %370 = vmatprep.subr.bf16.mxu0 0
  %371 = vmatpush2.bf16.msra.mxu0 %v337
  %372 = vmatprep.subr.bf16.mxu0 0
  %373 = vmatpush2.bf16.msra.mxu0 %v336
  %374 = vmatprep.subr.bf16.mxu0 0
  %375 = vmatpush2.bf16.msra.mxu0 %v335
  %376 = vmatprep.subr.bf16.mxu0 0
  %377 = vmatpush2.bf16.msra.mxu0 %v334
  %378 = vmatprep.subr.bf16.mxu0 0
  %379 = vmatpush2.bf16.msra.mxu0 %v333
  %380 = vmatprep.subr.bf16.mxu0 0
  %381 = vmatpush2.bf16.msra.mxu0 %v332
  %382 = vmatprep.subr.bf16.mxu0 0
  %383 = vmatpush2.bf16.msra.mxu0 %v331
  %384 = vmatprep.subr.bf16.mxu0 0
  %385 = vmatpush2.bf16.msra.mxu0 %v330
  %386 = vmatprep.mubr.bf16.mxu0 %v195
  %387 = vmatmul.mubr.bf16.gmra.mxu0 %v194
  %v388 = vpop.f32.mrf.mxu0
  %v389 = vadd.f32 %v96, %v388
  %v390 = vpop.f32.mrf.mxu0
  %v391 = vpop.f32.mrf.mxu0
  %v392 = vadd.f32 %v96, %v391
  %v393 = vpop.f32.mrf.mxu0
  %394 = vmatprep.mubr.bf16.mxu0 %v197
  %395 = vmatmul.mubr.bf16.gmra.mxu0 %v196
  %v396 = vpop.f32.mrf.mxu0
  %v397 = vadd.f32 %v96, %v396
  %v398 = vpop.f32.mrf.mxu0
  %v399 = vpop.f32.mrf.mxu0
  %v400 = vadd.f32 %v96, %v399
  %v401 = vpop.f32.mrf.mxu0
  %402 = vmatprep.mubr.bf16.mxu0 %v199
  %403 = vmatmul.mubr.bf16.gmra.mxu0 %v198
  %v404 = vpop.f32.mrf.mxu0
  %v405 = vadd.f32 %v96, %v404
  %v406 = vpop.f32.mrf.mxu0
  %v407 = vpop.f32.mrf.mxu0
  %v408 = vadd.f32 %v96, %v407
  %v409 = vpop.f32.mrf.mxu0
  %410 = vmatprep.mubr.bf16.mxu0 %v201
  %411 = vmatmul.mubr.bf16.gmra.mxu0 %v200
  %v412 = vpop.f32.mrf.mxu0
  %v413 = vadd.f32 %v96, %v412
  %v414 = vpop.f32.mrf.mxu0
  %v415 = vpop.f32.mrf.mxu0
  %v416 = vadd.f32 %v96, %v415
  %v417 = vpop.f32.mrf.mxu0
  %418 = vmatprep.mubr.bf16.mxu0 %v203
  %419 = vmatmul.mubr.bf16.gmra.mxu0 %v202
  %v420 = vpop.f32.mrf.mxu0
  %v421 = vadd.f32 %v96, %v420
  %v422 = vpop.f32.mrf.mxu0
  %v423 = vpop.f32.mrf.mxu0
  %v424 = vadd.f32 %v96, %v423
  %v425 = vpop.f32.mrf.mxu0
  %426 = vmatprep.mubr.bf16.mxu0 %v205
  %427 = vmatmul.mubr.bf16.gmra.mxu0 %v204
  %v428 = vpop.f32.mrf.mxu0
  %v429 = vadd.f32 %v96, %v428
  %v430 = vpop.f32.mrf.mxu0
  %v431 = vpop.f32.mrf.mxu0
  %v432 = vadd.f32 %v96, %v431
  %v433 = vpop.f32.mrf.mxu0
  %434 = vmatprep.mubr.bf16.mxu0 %v207
  %435 = vmatmul.mubr.bf16.gmra.mxu0 %v206
  %v436 = vpop.f32.mrf.mxu0
  %v437 = vadd.f32 %v96, %v436
  %v438 = vpop.f32.mrf.mxu0
  %v439 = vpop.f32.mrf.mxu0
  %v440 = vadd.f32 %v96, %v439
  %v441 = vpop.f32.mrf.mxu0
  %442 = vmatprep.mubr.bf16.mxu0 %v209
  %443 = vmatmul.mubr.bf16.gmra.mxu0 %v208
  %v444 = vpop.f32.mrf.mxu0
  %v445 = vadd.f32 %v96, %v444
  %v446 = vpop.f32.mrf.mxu0
  %v447 = vpop.f32.mrf.mxu0
  %v448 = vadd.f32 %v96, %v447
  %v449 = vpop.f32.mrf.mxu0
  %450 = vmatprep.mubr.bf16.mxu0 %v211
  %451 = vmatmul.mubr.bf16.gmra.mxu0 %v210
  %v452 = vpop.f32.mrf.mxu0
  %v453 = vadd.f32 %v96, %v452
  %v454 = vpop.f32.mrf.mxu0
  %v455 = vpop.f32.mrf.mxu0
  %v456 = vadd.f32 %v96, %v455
  %v457 = vpop.f32.mrf.mxu0
  %458 = vmatprep.mubr.bf16.mxu0 %v213
  %459 = vmatmul.mubr.bf16.gmra.mxu0 %v212
  %v460 = vpop.f32.mrf.mxu0
  %v461 = vadd.f32 %v96, %v460
  %v462 = vpop.f32.mrf.mxu0
  %v463 = vpop.f32.mrf.mxu0
  %v464 = vadd.f32 %v96, %v463
  %v465 = vpop.f32.mrf.mxu0
  %466 = vmatprep.mubr.bf16.mxu0 %v215
  %467 = vmatmul.mubr.bf16.gmra.mxu0 %v214
  %v468 = vpop.f32.mrf.mxu0
  %v469 = vadd.f32 %v96, %v468
  %v470 = vpop.f32.mrf.mxu0
  %v471 = vpop.f32.mrf.mxu0
  %v472 = vadd.f32 %v96, %v471
  %v473 = vpop.f32.mrf.mxu0
  %474 = vmatprep.mubr.bf16.mxu0 %v217
  %475 = vmatmul.mubr.bf16.gmra.mxu0 %v216
  %v476 = vpop.f32.mrf.mxu0
  %v477 = vadd.f32 %v96, %v476
  %v478 = vpop.f32.mrf.mxu0
  %v479 = vpop.f32.mrf.mxu0
  %v480 = vadd.f32 %v96, %v479
  %v481 = vpop.f32.mrf.mxu0
  %482 = vmatprep.mubr.bf16.mxu0 %v219
  %483 = vmatmul.mubr.bf16.gmra.mxu0 %v218
  %v484 = vpop.f32.mrf.mxu0
  %v485 = vadd.f32 %v96, %v484
  %v486 = vpop.f32.mrf.mxu0
  %v487 = vpop.f32.mrf.mxu0
  %v488 = vadd.f32 %v96, %v487
  %v489 = vpop.f32.mrf.mxu0
  %490 = vmatprep.mubr.bf16.mxu0 %v221
  %491 = vmatmul.mubr.bf16.gmra.mxu0 %v220
  %v492 = vpop.f32.mrf.mxu0
  %v493 = vadd.f32 %v96, %v492
  %v494 = vpop.f32.mrf.mxu0
  %v495 = vpop.f32.mrf.mxu0
  %v496 = vadd.f32 %v96, %v495
  %v497 = vpop.f32.mrf.mxu0
  %498 = vmatprep.mubr.bf16.mxu0 %v223
  %499 = vmatmul.mubr.bf16.gmra.mxu0 %v222
  %v500 = vpop.f32.mrf.mxu0
  %v501 = vadd.f32 %v96, %v500
  %v502 = vpop.f32.mrf.mxu0
  %v503 = vpop.f32.mrf.mxu0
  %v504 = vadd.f32 %v96, %v503
  %v505 = vpop.f32.mrf.mxu0
  %506 = vmatprep.mubr.bf16.mxu0 %v225
  %507 = vmatmul.mubr.bf16.gmra.mxu0 %v224
  %v508 = vpop.f32.mrf.mxu0
  %v509 = vadd.f32 %v96, %v508
  %v510 = vpop.f32.mrf.mxu0
  %v511 = vpop.f32.mrf.mxu0
  %v512 = vadd.f32 %v96, %v511
  %v513 = vpop.f32.mrf.mxu0
  %514 = vdwg.mxu0
  %v515 = vlaneseq
  %v516 = vshrl.u32 %v515, 7
  %v517 = vadd.s32 %v516, 8
  %v518 = vadd.s32 %v516, 16
  %v519 = vadd.s32 %v516, 24
  %v520 = vadd.s32 %v516, 32
  %v521 = vadd.s32 %v516, 40
  %v522 = vadd.s32 %v516, 48
  %v523 = vadd.s32 %v516, 56
  %v524 = vadd.s32 %v516, 64
  %v525 = vadd.s32 %v516, 72
  %v526 = vadd.s32 %v516, 80
  %v527 = vadd.s32 %v516, 88
  %v528 = vadd.s32 %v516, 96
  %v529 = vadd.s32 %v516, 104
  %v530 = vadd.s32 %v516, 112
  %v531 = vadd.s32 %v516, 120
  %v532 = vadd.s32 %v516, 128
  %v533 = vadd.s32 %v516, 136
  %v534 = vadd.s32 %v516, 144
  %v535 = vadd.s32 %v516, 152
  %v536 = vadd.s32 %v516, 160
  %v537 = vadd.s32 %v516, 168
  %v538 = vadd.s32 %v516, 176
  %v539 = vadd.s32 %v516, 184
  %v540 = vadd.s32 %v516, 192
  %v541 = vadd.s32 %v516, 200
  %v542 = vadd.s32 %v516, 208
  %v543 = vadd.s32 %v516, 216
  %v544 = vadd.s32 %v516, 224
  %v545 = vadd.s32 %v516, 232
  %v546 = vadd.s32 %v516, 240
  %v547 = vadd.s32 %v516, 248
  %vm548 = vcmp.lt.s32.totalorder %v516, 160
  %vm549 = vcmp.lt.s32.totalorder %v517, 160
  %vm550 = vcmp.lt.s32.totalorder %v518, 160
  %vm551 = vcmp.lt.s32.totalorder %v519, 160
  %vm552 = vcmp.lt.s32.totalorder %v520, 160
  %vm553 = vcmp.lt.s32.totalorder %v521, 160
  %vm554 = vcmp.lt.s32.totalorder %v522, 160
  %vm555 = vcmp.lt.s32.totalorder %v523, 160
  %vm556 = vcmp.lt.s32.totalorder %v524, 160
  %vm557 = vcmp.lt.s32.totalorder %v525, 160
  %vm558 = vcmp.lt.s32.totalorder %v526, 160
  %vm559 = vcmp.lt.s32.totalorder %v527, 160
  %vm560 = vcmp.lt.s32.totalorder %v528, 160
  %vm561 = vcmp.lt.s32.totalorder %v529, 160
  %vm562 = vcmp.lt.s32.totalorder %v530, 160
  %vm563 = vcmp.lt.s32.totalorder %v531, 160
  %vm564 = vcmp.lt.s32.totalorder %v532, 160
  %vm565 = vcmp.lt.s32.totalorder %v533, 160
  %vm566 = vcmp.lt.s32.totalorder %v534, 160
  %vm567 = vcmp.lt.s32.totalorder %v535, 160
  %vm568 = vcmp.lt.s32.totalorder %v536, 160
  %vm569 = vcmp.lt.s32.totalorder %v537, 160
  %vm570 = vcmp.lt.s32.totalorder %v538, 160
  %vm571 = vcmp.lt.s32.totalorder %v539, 160
  %vm572 = vcmp.lt.s32.totalorder %v540, 160
  %vm573 = vcmp.lt.s32.totalorder %v541, 160
  %vm574 = vcmp.lt.s32.totalorder %v542, 160
  %vm575 = vcmp.lt.s32.totalorder %v543, 160
  %vm576 = vcmp.lt.s32.totalorder %v544, 160
  %vm577 = vcmp.lt.s32.totalorder %v545, 160
  %vm578 = vcmp.lt.s32.totalorder %v546, 160
  %vm579 = vcmp.lt.s32.totalorder %v547, 160
  %v580 = vsel %vm548, %v389, 0.0
  %v581 = vsel %vm549, %v392, 0.0
  %v582 = vsel %vm550, %v397, 0.0
  %v583 = vsel %vm551, %v400, 0.0
  %v584 = vsel %vm552, %v405, 0.0
  %v585 = vsel %vm553, %v408, 0.0
  %v586 = vsel %vm554, %v413, 0.0
  %v587 = vsel %vm555, %v416, 0.0
  %v588 = vsel %vm556, %v421, 0.0
  %v589 = vsel %vm557, %v424, 0.0
  %v590 = vsel %vm558, %v429, 0.0
  %v591 = vsel %vm559, %v432, 0.0
  %v592 = vsel %vm560, %v437, 0.0
  %v593 = vsel %vm561, %v440, 0.0
  %v594 = vsel %vm562, %v445, 0.0
  %v595 = vsel %vm563, %v448, 0.0
  %v596 = vsel %vm564, %v453, 0.0
  %v597 = vsel %vm565, %v456, 0.0
  %v598 = vsel %vm566, %v461, 0.0
  %v599 = vsel %vm567, %v464, 0.0
  %v600 = vsel %vm568, %v469, 0.0
  %v601 = vsel %vm569, %v472, 0.0
  %v602 = vsel %vm570, %v477, 0.0
  %v603 = vsel %vm571, %v480, 0.0
  %v604 = vsel %vm572, %v485, 0.0
  %v605 = vsel %vm573, %v488, 0.0
  %v606 = vsel %vm574, %v493, 0.0
  %v607 = vsel %vm575, %v496, 0.0
  %v608 = vsel %vm576, %v501, 0.0
  %v609 = vsel %vm577, %v504, 0.0
  %v610 = vsel %vm578, %v509, 0.0
  %v611 = vsel %vm579, %v512, 0.0
  %v612 = vadd.f32 %v580, %v581
  %v613 = vadd.f32 %v612, %v582
  %v614 = vadd.f32 %v613, %v583
  %v615 = vadd.f32 %v614, %v584
  %v616 = vadd.f32 %v615, %v585
  %v617 = vadd.f32 %v616, %v586
  %v618 = vadd.f32 %v617, %v587
  %v619 = vadd.f32 %v618, %v588
  %v620 = vadd.f32 %v619, %v589
  %v621 = vadd.f32 %v620, %v590
  %v622 = vadd.f32 %v621, %v591
  %v623 = vadd.f32 %v622, %v592
  %v624 = vadd.f32 %v623, %v593
  %v625 = vadd.f32 %v624, %v594
  %v626 = vadd.f32 %v625, %v595
  %v627 = vadd.f32 %v626, %v596
  %v628 = vadd.f32 %v627, %v597
  %v629 = vadd.f32 %v628, %v598
  %v630 = vadd.f32 %v629, %v599
  %v631 = vadd.f32 %v630, %v600
  %v632 = vadd.f32 %v631, %v601
  %v633 = vadd.f32 %v632, %v602
  %v634 = vadd.f32 %v633, %v603
  %v635 = vadd.f32 %v634, %v604
  %v636 = vadd.f32 %v635, %v605
  %v637 = vadd.f32 %v636, %v606
  %v638 = vadd.f32 %v637, %v607
  %v639 = vadd.f32 %v638, %v608
  %v640 = vadd.f32 %v639, %v609
  %v641 = vadd.f32 %v640, %v610
  %v642 = vadd.f32 %v641, %v611
  %v643 = vrot.slane %v642, 4
  %v644 = vadd.f32 %v642, %v643
  %v645 = vrot.slane %v644, 2
  %v646 = vadd.f32 %v644, %v645
  %v647 = vrot.slane %v646, 1
  %v648 = vadd.f32 %v646, %v647
  %v649 = vmul.f32 %v648, 0.00625
  %v650 = vsub.f32 %v389, %v649
  %v651 = vsub.f32 %v392, %v649
  %v652 = vsub.f32 %v397, %v649
  %v653 = vsub.f32 %v400, %v649
  %v654 = vsub.f32 %v405, %v649
  %v655 = vsub.f32 %v408, %v649
  %v656 = vsub.f32 %v413, %v649
  %v657 = vsub.f32 %v416, %v649
  %v658 = vsub.f32 %v421, %v649
  %v659 = vsub.f32 %v424, %v649
  %v660 = vsub.f32 %v429, %v649
  %v661 = vsub.f32 %v432, %v649
  %v662 = vsub.f32 %v437, %v649
  %v663 = vsub.f32 %v440, %v649
  %v664 = vsub.f32 %v445, %v649
  %v665 = vsub.f32 %v448, %v649
  %v666 = vsub.f32 %v453, %v649
  %v667 = vsub.f32 %v456, %v649
  %v668 = vsub.f32 %v461, %v649
  %v669 = vsub.f32 %v464, %v649
  %v670 = vsub.f32 %v469, %v649
  %v671 = vsub.f32 %v472, %v649
  %v672 = vsub.f32 %v477, %v649
  %v673 = vsub.f32 %v480, %v649
  %v674 = vsub.f32 %v485, %v649
  %v675 = vsub.f32 %v488, %v649
  %v676 = vsub.f32 %v493, %v649
  %v677 = vsub.f32 %v496, %v649
  %v678 = vsub.f32 %v501, %v649
  %v679 = vsub.f32 %v504, %v649
  %v680 = vsub.f32 %v509, %v649
  %v681 = vsub.f32 %v512, %v649
  %v682 = vsel %vm548, %v650, 0.0
  %v683 = vsel %vm549, %v651, 0.0
  %v684 = vsel %vm550, %v652, 0.0
  %v685 = vsel %vm551, %v653, 0.0
  %v686 = vsel %vm552, %v654, 0.0
  %v687 = vsel %vm553, %v655, 0.0
  %v688 = vsel %vm554, %v656, 0.0
  %v689 = vsel %vm555, %v657, 0.0
  %v690 = vsel %vm556, %v658, 0.0
  %v691 = vsel %vm557, %v659, 0.0
  %v692 = vsel %vm558, %v660, 0.0
  %v693 = vsel %vm559, %v661, 0.0
  %v694 = vsel %vm560, %v662, 0.0
  %v695 = vsel %vm561, %v663, 0.0
  %v696 = vsel %vm562, %v664, 0.0
  %v697 = vsel %vm563, %v665, 0.0
  %v698 = vsel %vm564, %v666, 0.0
  %v699 = vsel %vm565, %v667, 0.0
  %v700 = vsel %vm566, %v668, 0.0
  %v701 = vsel %vm567, %v669, 0.0
  %v702 = vsel %vm568, %v670, 0.0
  %v703 = vsel %vm569, %v671, 0.0
  %v704 = vsel %vm570, %v672, 0.0
  %v705 = vsel %vm571, %v673, 0.0
  %v706 = vsel %vm572, %v674, 0.0
  %v707 = vsel %vm573, %v675, 0.0
  %v708 = vsel %vm574, %v676, 0.0
  %v709 = vsel %vm575, %v677, 0.0
  %v710 = vsel %vm576, %v678, 0.0
  %v711 = vsel %vm577, %v679, 0.0
  %v712 = vsel %vm578, %v680, 0.0
  %v713 = vsel %vm579, %v681, 0.0
  %v714 = vmul.f32 %v682, %v682
  %v715 = vmul.f32 %v683, %v683
  %v716 = vmul.f32 %v684, %v684
  %v717 = vmul.f32 %v685, %v685
  %v718 = vmul.f32 %v686, %v686
  %v719 = vmul.f32 %v687, %v687
  %v720 = vmul.f32 %v688, %v688
  %v721 = vmul.f32 %v689, %v689
  %v722 = vmul.f32 %v690, %v690
  %v723 = vmul.f32 %v691, %v691
  %v724 = vmul.f32 %v692, %v692
  %v725 = vmul.f32 %v693, %v693
  %v726 = vmul.f32 %v694, %v694
  %v727 = vmul.f32 %v695, %v695
  %v728 = vmul.f32 %v696, %v696
  %v729 = vmul.f32 %v697, %v697
  %v730 = vmul.f32 %v698, %v698
  %v731 = vmul.f32 %v699, %v699
  %v732 = vmul.f32 %v700, %v700
  %v733 = vmul.f32 %v701, %v701
  %v734 = vmul.f32 %v702, %v702
  %v735 = vmul.f32 %v703, %v703
  %v736 = vmul.f32 %v704, %v704
  %v737 = vmul.f32 %v705, %v705
  %v738 = vmul.f32 %v706, %v706
  %v739 = vmul.f32 %v707, %v707
  %v740 = vmul.f32 %v708, %v708
  %v741 = vmul.f32 %v709, %v709
  %v742 = vmul.f32 %v710, %v710
  %v743 = vmul.f32 %v711, %v711
  %v744 = vmul.f32 %v712, %v712
  %v745 = vmul.f32 %v713, %v713
  %v746 = vadd.f32 %v714, %v715
  %v747 = vadd.f32 %v746, %v716
  %v748 = vadd.f32 %v747, %v717
  %v749 = vadd.f32 %v748, %v718
  %v750 = vadd.f32 %v749, %v719
  %v751 = vadd.f32 %v750, %v720
  %v752 = vadd.f32 %v751, %v721
  %v753 = vadd.f32 %v752, %v722
  %v754 = vadd.f32 %v753, %v723
  %v755 = vadd.f32 %v754, %v724
  %v756 = vadd.f32 %v755, %v725
  %v757 = vadd.f32 %v756, %v726
  %v758 = vadd.f32 %v757, %v727
  %v759 = vadd.f32 %v758, %v728
  %v760 = vadd.f32 %v759, %v729
  %v761 = vadd.f32 %v760, %v730
  %v762 = vadd.f32 %v761, %v731
  %v763 = vadd.f32 %v762, %v732
  %v764 = vadd.f32 %v763, %v733
  %v765 = vadd.f32 %v764, %v734
  %v766 = vadd.f32 %v765, %v735
  %v767 = vadd.f32 %v766, %v736
  %v768 = vadd.f32 %v767, %v737
  %v769 = vadd.f32 %v768, %v738
  %v770 = vadd.f32 %v769, %v739
  %v771 = vadd.f32 %v770, %v740
  %v772 = vadd.f32 %v771, %v741
  %v773 = vadd.f32 %v772, %v742
  %v774 = vadd.f32 %v773, %v743
  %v775 = vadd.f32 %v774, %v744
  %v776 = vadd.f32 %v775, %v745
  %v777 = vrot.slane %v776, 4
  %v778 = vadd.f32 %v776, %v777
  %v779 = vrot.slane %v778, 2
  %v780 = vadd.f32 %v778, %v779
  %v781 = vrot.slane %v780, 1
  %v782 = vadd.f32 %v780, %v781
  %v783 = vmul.f32 %v782, 0.00625
  %v784 = vld [vmem:[%s3] sm:$0x1]
  %v785 = vadd.f32 %v783, 1e-05
  %v786 = vrsqrt.pop %v785
  %v787 = vmul.f32 %v784, %v786
  %v788 = vld [vmem:[%s4] sm:$0x1]
  %v789 = vmul.f32 %v649, %v787
  %v790 = vsub.f32 %v788, %v789
  %v792 = vlaneseq
  %v793 = vshrl.u32 %v792, 7
  %v794 = vsub.s32 0, %v793
  %v795 = vrot.slane %v787, %v794
  %v797 = vmul.f32 %v389, %v795
  %v798 = vmul.f32 %v392, %v795
  %v799 = vmul.f32 %v397, %v795
  %v800 = vmul.f32 %v400, %v795
  %v801 = vmul.f32 %v405, %v795
  %v802 = vmul.f32 %v408, %v795
  %v803 = vmul.f32 %v413, %v795
  %v804 = vmul.f32 %v416, %v795
  %v805 = vmul.f32 %v421, %v795
  %v806 = vmul.f32 %v424, %v795
  %v807 = vmul.f32 %v429, %v795
  %v808 = vmul.f32 %v432, %v795
  %v809 = vmul.f32 %v437, %v795
  %v810 = vmul.f32 %v440, %v795
  %v811 = vmul.f32 %v445, %v795
  %v812 = vmul.f32 %v448, %v795
  %v813 = vmul.f32 %v453, %v795
  %v814 = vmul.f32 %v456, %v795
  %v815 = vmul.f32 %v461, %v795
  %v816 = vmul.f32 %v464, %v795
  %v817 = vmul.f32 %v469, %v795
  %v818 = vmul.f32 %v472, %v795
  %v819 = vmul.f32 %v477, %v795
  %v820 = vmul.f32 %v480, %v795
  %v821 = vmul.f32 %v485, %v795
  %v822 = vmul.f32 %v488, %v795
  %v823 = vmul.f32 %v493, %v795
  %v824 = vmul.f32 %v496, %v795
  %v825 = vmul.f32 %v501, %v795
  %v826 = vmul.f32 %v504, %v795
  %v827 = vmul.f32 %v509, %v795
  %v828 = vmul.f32 %v512, %v795
  %v830 = vlaneseq
  %v831 = vshrl.u32 %v830, 7
  %v832 = vsub.s32 0, %v831
  %v833 = vrot.slane %v790, %v832
  %v835 = vadd.f32 %v797, %v833
  %v836 = vadd.f32 %v798, %v833
  %v837 = vadd.f32 %v799, %v833
  %v838 = vadd.f32 %v800, %v833
  %v839 = vadd.f32 %v801, %v833
  %v840 = vadd.f32 %v802, %v833
  %v841 = vadd.f32 %v803, %v833
  %v842 = vadd.f32 %v804, %v833
  %v843 = vadd.f32 %v805, %v833
  %v844 = vadd.f32 %v806, %v833
  %v845 = vadd.f32 %v807, %v833
  %v846 = vadd.f32 %v808, %v833
  %v847 = vadd.f32 %v809, %v833
  %v848 = vadd.f32 %v810, %v833
  %v849 = vadd.f32 %v811, %v833
  %v850 = vadd.f32 %v812, %v833
  %v851 = vadd.f32 %v813, %v833
  %v852 = vadd.f32 %v814, %v833
  %v853 = vadd.f32 %v815, %v833
  %v854 = vadd.f32 %v816, %v833
  %v855 = vadd.f32 %v817, %v833
  %v856 = vadd.f32 %v818, %v833
  %v857 = vadd.f32 %v819, %v833
  %v858 = vadd.f32 %v820, %v833
  %v859 = vadd.f32 %v821, %v833
  %v860 = vadd.f32 %v822, %v833
  %v861 = vadd.f32 %v823, %v833
  %v862 = vadd.f32 %v824, %v833
  %v863 = vadd.f32 %v825, %v833
  %v864 = vadd.f32 %v826, %v833
  %v865 = vadd.f32 %v827, %v833
  %v866 = vadd.f32 %v828, %v833
  %v867 = vmax.f32 %v835, 0.0
  %v868 = vmax.f32 %v836, 0.0
  %v869 = vmax.f32 %v837, 0.0
  %v870 = vmax.f32 %v838, 0.0
  %v871 = vmax.f32 %v839, 0.0
  %v872 = vmax.f32 %v840, 0.0
  %v873 = vmax.f32 %v841, 0.0
  %v874 = vmax.f32 %v842, 0.0
  %v875 = vmax.f32 %v843, 0.0
  %v876 = vmax.f32 %v844, 0.0
  %v877 = vmax.f32 %v845, 0.0
  %v878 = vmax.f32 %v846, 0.0
  %v879 = vmax.f32 %v847, 0.0
  %v880 = vmax.f32 %v848, 0.0
  %v881 = vmax.f32 %v849, 0.0
  %v882 = vmax.f32 %v850, 0.0
  %v883 = vmax.f32 %v851, 0.0
  %v884 = vmax.f32 %v852, 0.0
  %v885 = vmax.f32 %v853, 0.0
  %v886 = vmax.f32 %v854, 0.0
  %v887 = vmax.f32 %v855, 0.0
  %v888 = vmax.f32 %v856, 0.0
  %v889 = vmax.f32 %v857, 0.0
  %v890 = vmax.f32 %v858, 0.0
  %v891 = vmax.f32 %v859, 0.0
  %v892 = vmax.f32 %v860, 0.0
  %v893 = vmax.f32 %v861, 0.0
  %v894 = vmax.f32 %v862, 0.0
  %v895 = vmax.f32 %v863, 0.0
  %v896 = vmax.f32 %v864, 0.0
  %v897 = vmax.f32 %v865, 0.0
  %v898 = vmax.f32 %v866, 0.0
  %v899 = vpack.c.bf16 %v868, %v867
  %v900 = vpack.c.bf16 %v870, %v869
  %v901 = vpack.c.bf16 %v872, %v871
  %v902 = vpack.c.bf16 %v874, %v873
  %v903 = vpack.c.bf16 %v876, %v875
  %v904 = vpack.c.bf16 %v878, %v877
  %v905 = vpack.c.bf16 %v880, %v879
  %v906 = vpack.c.bf16 %v882, %v881
  %v907 = vpack.c.bf16 %v884, %v883
  %v908 = vpack.c.bf16 %v886, %v885
  %v909 = vpack.c.bf16 %v888, %v887
  %v910 = vpack.c.bf16 %v890, %v889
  %v911 = vpack.c.bf16 %v892, %v891
  %v912 = vpack.c.bf16 %v894, %v893
  %v913 = vpack.c.bf16 %v896, %v895
  %v914 = vpack.c.bf16 %v898, %v897
  %915 = vmatprep.subr.bf16.mxu0 0
  %916 = vmatpush1.bf16.msra.mxu0 %v906
  %917 = vmatprep.subr.bf16.mxu0 0
  %918 = vmatpush1.bf16.msra.mxu0 %v905
  %919 = vmatprep.subr.bf16.mxu0 0
  %920 = vmatpush1.bf16.msra.mxu0 %v904
  %921 = vmatprep.subr.bf16.mxu0 0
  %922 = vmatpush1.bf16.msra.mxu0 %v903
  %923 = vmatprep.subr.bf16.mxu0 0
  %924 = vmatpush1.bf16.msra.mxu0 %v902
  %925 = vmatprep.subr.bf16.mxu0 0
  %926 = vmatpush1.bf16.msra.mxu0 %v901
  %927 = vmatprep.subr.bf16.mxu0 0
  %928 = vmatpush1.bf16.msra.mxu0 %v900
  %929 = vmatprep.subr.bf16.mxu0 0
  %930 = vmatpush1.bf16.msra.mxu0 %v899
  %931 = vmatprep.subr.bf16.mxu0 0
  %932 = vmatpush2.bf16.msra.mxu0 %v914
  %933 = vmatprep.subr.bf16.mxu0 0
  %934 = vmatpush2.bf16.msra.mxu0 %v913
  %935 = vmatprep.subr.bf16.mxu0 0
  %936 = vmatpush2.bf16.msra.mxu0 %v912
  %937 = vmatprep.subr.bf16.mxu0 0
  %938 = vmatpush2.bf16.msra.mxu0 %v911
  %939 = vmatprep.subr.bf16.mxu0 0
  %940 = vmatpush2.bf16.msra.mxu0 %v910
  %941 = vmatprep.subr.bf16.mxu0 0
  %942 = vmatpush2.bf16.msra.mxu0 %v909
  %943 = vmatprep.subr.bf16.mxu0 0
  %944 = vmatpush2.bf16.msra.mxu0 %v908
  %945 = vmatprep.subr.bf16.mxu0 0
  %946 = vmatpush2.bf16.msra.mxu0 %v907
  %947 = vmatprep.mubr.bf16.mxu0 %v195
  %948 = vmatmul.mubr.bf16.gmra.mxu0 %v194
  %v949 = vpop.f32.mrf.mxu0
  %v950 = vadd.f32 0.0, %v949
  %v951 = vpop.f32.mrf.mxu0
  %v952 = vpop.f32.mrf.mxu0
  %v953 = vadd.f32 0.0, %v952
  %v954 = vpop.f32.mrf.mxu0
  %955 = vmatprep.mubr.bf16.mxu0 %v197
  %956 = vmatmul.mubr.bf16.gmra.mxu0 %v196
  %v957 = vpop.f32.mrf.mxu0
  %v958 = vadd.f32 0.0, %v957
  %v959 = vpop.f32.mrf.mxu0
  %v960 = vpop.f32.mrf.mxu0
  %v961 = vadd.f32 0.0, %v960
  %v962 = vpop.f32.mrf.mxu0
  %963 = vmatprep.mubr.bf16.mxu0 %v199
  %964 = vmatmul.mubr.bf16.gmra.mxu0 %v198
  %v965 = vpop.f32.mrf.mxu0
  %v966 = vadd.f32 0.0, %v965
  %v967 = vpop.f32.mrf.mxu0
  %v968 = vpop.f32.mrf.mxu0
  %v969 = vadd.f32 0.0, %v968
  %v970 = vpop.f32.mrf.mxu0
  %971 = vmatprep.mubr.bf16.mxu0 %v201
  %972 = vmatmul.mubr.bf16.gmra.mxu0 %v200
  %v973 = vpop.f32.mrf.mxu0
  %v974 = vadd.f32 0.0, %v973
  %v975 = vpop.f32.mrf.mxu0
  %v976 = vpop.f32.mrf.mxu0
  %v977 = vadd.f32 0.0, %v976
  %v978 = vpop.f32.mrf.mxu0
  %979 = vmatprep.mubr.bf16.mxu0 %v203
  %980 = vmatmul.mubr.bf16.gmra.mxu0 %v202
  %v981 = vpop.f32.mrf.mxu0
  %v982 = vadd.f32 0.0, %v981
  %v983 = vpop.f32.mrf.mxu0
  %v984 = vpop.f32.mrf.mxu0
  %v985 = vadd.f32 0.0, %v984
  %v986 = vpop.f32.mrf.mxu0
  %987 = vmatprep.mubr.bf16.mxu0 %v205
  %988 = vmatmul.mubr.bf16.gmra.mxu0 %v204
  %v989 = vpop.f32.mrf.mxu0
  %v990 = vadd.f32 0.0, %v989
  %v991 = vpop.f32.mrf.mxu0
  %v992 = vpop.f32.mrf.mxu0
  %v993 = vadd.f32 0.0, %v992
  %v994 = vpop.f32.mrf.mxu0
  %995 = vmatprep.mubr.bf16.mxu0 %v207
  %996 = vmatmul.mubr.bf16.gmra.mxu0 %v206
  %v997 = vpop.f32.mrf.mxu0
  %v998 = vadd.f32 0.0, %v997
  %v999 = vpop.f32.mrf.mxu0
  %v1000 = vpop.f32.mrf.mxu0
  %v1001 = vadd.f32 0.0, %v1000
  %v1002 = vpop.f32.mrf.mxu0
  %1003 = vmatprep.mubr.bf16.mxu0 %v209
  %1004 = vmatmul.mubr.bf16.gmra.mxu0 %v208
  %v1005 = vpop.f32.mrf.mxu0
  %v1006 = vadd.f32 0.0, %v1005
  %v1007 = vpop.f32.mrf.mxu0
  %v1008 = vpop.f32.mrf.mxu0
  %v1009 = vadd.f32 0.0, %v1008
  %v1010 = vpop.f32.mrf.mxu0
  %1011 = vmatprep.mubr.bf16.mxu0 %v211
  %1012 = vmatmul.mubr.bf16.gmra.mxu0 %v210
  %v1013 = vpop.f32.mrf.mxu0
  %v1014 = vadd.f32 0.0, %v1013
  %v1015 = vpop.f32.mrf.mxu0
  %v1016 = vpop.f32.mrf.mxu0
  %v1017 = vadd.f32 0.0, %v1016
  %v1018 = vpop.f32.mrf.mxu0
  %1019 = vmatprep.mubr.bf16.mxu0 %v213
  %1020 = vmatmul.mubr.bf16.gmra.mxu0 %v212
  %v1021 = vpop.f32.mrf.mxu0
  %v1022 = vadd.f32 0.0, %v1021
  %v1023 = vpop.f32.mrf.mxu0
  %v1024 = vpop.f32.mrf.mxu0
  %v1025 = vadd.f32 0.0, %v1024
  %v1026 = vpop.f32.mrf.mxu0
  %1027 = vmatprep.mubr.bf16.mxu0 %v215
  %1028 = vmatmul.mubr.bf16.gmra.mxu0 %v214
  %v1029 = vpop.f32.mrf.mxu0
  %v1030 = vadd.f32 0.0, %v1029
  %v1031 = vpop.f32.mrf.mxu0
  %v1032 = vpop.f32.mrf.mxu0
  %v1033 = vadd.f32 0.0, %v1032
  %v1034 = vpop.f32.mrf.mxu0
  %1035 = vmatprep.mubr.bf16.mxu0 %v217
  %1036 = vmatmul.mubr.bf16.gmra.mxu0 %v216
  %v1037 = vpop.f32.mrf.mxu0
  %v1038 = vadd.f32 0.0, %v1037
  %v1039 = vpop.f32.mrf.mxu0
  %v1040 = vpop.f32.mrf.mxu0
  %v1041 = vadd.f32 0.0, %v1040
  %v1042 = vpop.f32.mrf.mxu0
  %1043 = vmatprep.mubr.bf16.mxu0 %v219
  %1044 = vmatmul.mubr.bf16.gmra.mxu0 %v218
  %v1045 = vpop.f32.mrf.mxu0
  %v1046 = vadd.f32 0.0, %v1045
  %v1047 = vpop.f32.mrf.mxu0
  %v1048 = vpop.f32.mrf.mxu0
  %v1049 = vadd.f32 0.0, %v1048
  %v1050 = vpop.f32.mrf.mxu0
  %1051 = vmatprep.mubr.bf16.mxu0 %v221
  %1052 = vmatmul.mubr.bf16.gmra.mxu0 %v220
  %v1053 = vpop.f32.mrf.mxu0
  %v1054 = vadd.f32 0.0, %v1053
  %v1055 = vpop.f32.mrf.mxu0
  %v1056 = vpop.f32.mrf.mxu0
  %v1057 = vadd.f32 0.0, %v1056
  %v1058 = vpop.f32.mrf.mxu0
  %1059 = vmatprep.mubr.bf16.mxu0 %v223
  %1060 = vmatmul.mubr.bf16.gmra.mxu0 %v222
  %v1061 = vpop.f32.mrf.mxu0
  %v1062 = vadd.f32 0.0, %v1061
  %v1063 = vpop.f32.mrf.mxu0
  %v1064 = vpop.f32.mrf.mxu0
  %v1065 = vadd.f32 0.0, %v1064
  %v1066 = vpop.f32.mrf.mxu0
  %1067 = vmatprep.mubr.bf16.mxu0 %v225
  %1068 = vmatmul.mubr.bf16.gmra.mxu0 %v224
  %v1069 = vpop.f32.mrf.mxu0
  %v1070 = vadd.f32 0.0, %v1069
  %v1071 = vpop.f32.mrf.mxu0
  %v1072 = vpop.f32.mrf.mxu0
  %v1073 = vadd.f32 0.0, %v1072
  %v1074 = vpop.f32.mrf.mxu0
  %1075 = vdwg.mxu0
  %v1076 = vpack.c.bf16 %v953, %v950
  %v1077 = vpack.c.bf16 %v961, %v958
  %v1078 = vpack.c.bf16 %v969, %v966
  %v1079 = vpack.c.bf16 %v977, %v974
  %v1080 = vpack.c.bf16 %v985, %v982
  %v1081 = vpack.c.bf16 %v993, %v990
  %v1082 = vpack.c.bf16 %v1001, %v998
  %v1083 = vpack.c.bf16 %v1009, %v1006
  %v1084 = vpack.c.bf16 %v1017, %v1014
  %v1085 = vpack.c.bf16 %v1025, %v1022
  %v1086 = vpack.c.bf16 %v1033, %v1030
  %v1087 = vpack.c.bf16 %v1041, %v1038
  %v1088 = vpack.c.bf16 %v1049, %v1046
  %v1089 = vpack.c.bf16 %v1057, %v1054
  %v1090 = vpack.c.bf16 %v1065, %v1062
  %v1091 = vpack.c.bf16 %v1073, %v1070
  %v1092 = vld [vmem:[%s5] sm:$0xf]
  %v1093 = vld [vmem:[%s5 + $0x4] sm:$0xf]
  %v1094 = vld [vmem:[%s5 + $0x8] sm:$0xf]
  %v1095 = vld [vmem:[%s5 + $0xc] sm:$0xf]
  %v1096 = vld [vmem:[%s5 + $0x10] sm:$0xf]
  %v1097 = vld [vmem:[%s5 + $0x14] sm:$0xf]
  %v1098 = vld [vmem:[%s5 + $0x18] sm:$0xf]
  %v1099 = vld [vmem:[%s5 + $0x1c] sm:$0xf]
  %v1100 = vld [vmem:[%s5 + $0x20] sm:$0xf]
  %v1101 = vld [vmem:[%s5 + $0x24] sm:$0xf]
  %v1102 = vld [vmem:[%s5 + $0x28] sm:$0xf]
  %v1103 = vld [vmem:[%s5 + $0x2c] sm:$0xf]
  %v1104 = vld [vmem:[%s5 + $0x30] sm:$0xf]
  %v1105 = vld [vmem:[%s5 + $0x34] sm:$0xf]
  %v1106 = vld [vmem:[%s5 + $0x38] sm:$0xf]
  %v1107 = vld [vmem:[%s5 + $0x3c] sm:$0xf]
  %v1108 = vld [vmem:[%s6] sm:$0x1]
  %v1110 = vlaneseq
  %v1111 = vshrl.u32 %v1110, 7
  %v1112 = vsub.s32 0, %v1111
  %v1113 = vrot.slane %v1108, %v1112
  %v1131 = vunpack.c.l.b16 %v1092
  %v1132 = vunpack.c.l.b16 %v1093
  %v1133 = vunpack.c.l.b16 %v1094
  %v1134 = vunpack.c.l.b16 %v1095
  %v1135 = vunpack.c.l.b16 %v1096
  %v1136 = vunpack.c.l.b16 %v1097
  %v1137 = vunpack.c.l.b16 %v1098
  %v1138 = vunpack.c.l.b16 %v1099
  %v1139 = vunpack.c.l.b16 %v1100
  %v1140 = vunpack.c.l.b16 %v1101
  %v1141 = vunpack.c.l.b16 %v1102
  %v1142 = vunpack.c.l.b16 %v1103
  %v1143 = vunpack.c.l.b16 %v1104
  %v1144 = vunpack.c.l.b16 %v1105
  %v1145 = vunpack.c.l.b16 %v1106
  %v1146 = vunpack.c.l.b16 %v1107
  %v1147 = vpack.c.b16 %v1132, %v1131
  %v1148 = vpack.c.b16 %v1134, %v1133
  %v1149 = vpack.c.b16 %v1136, %v1135
  %v1150 = vpack.c.b16 %v1138, %v1137
  %v1151 = vpack.c.b16 %v1140, %v1139
  %v1152 = vpack.c.b16 %v1142, %v1141
  %v1153 = vpack.c.b16 %v1144, %v1143
  %v1154 = vpack.c.b16 %v1146, %v1145
  %1163 = vmatprep.subr.bf16.mxu0 0
  %1164 = vmatpush1.bf16.msra.mxu0 %v1154
  %1165 = vmatprep.subr.bf16.mxu0 0
  %1166 = vmatpush1.bf16.msra.mxu0 %v1153
  %1167 = vmatprep.subr.bf16.mxu0 0
  %1168 = vmatpush1.bf16.msra.mxu0 %v1152
  %1169 = vmatprep.subr.bf16.mxu0 0
  %1170 = vmatpush1.bf16.msra.mxu0 %v1151
  %1171 = vmatprep.subr.bf16.mxu0 0
  %1172 = vmatpush1.bf16.msra.mxu0 %v1150
  %1173 = vmatprep.subr.bf16.mxu0 0
  %1174 = vmatpush1.bf16.msra.mxu0 %v1149
  %1175 = vmatprep.subr.bf16.mxu0 0
  %1176 = vmatpush1.bf16.msra.mxu0 %v1148
  %1177 = vmatprep.subr.bf16.mxu0 0
  %1178 = vmatpush1.bf16.msra.mxu0 %v1147
  %1179 = vmatprep.subr.bf16.mxu0 0
  %1180 = vmatpush2.bf16.msra.mxu0 0
  %1181 = vmatprep.subr.bf16.mxu0 0
  %1182 = vmatpush2.bf16.msra.mxu0 0
  %1183 = vmatprep.subr.bf16.mxu0 0
  %1184 = vmatpush2.bf16.msra.mxu0 0
  %1185 = vmatprep.subr.bf16.mxu0 0
  %1186 = vmatpush2.bf16.msra.mxu0 0
  %1187 = vmatprep.subr.bf16.mxu0 0
  %1188 = vmatpush2.bf16.msra.mxu0 0
  %1189 = vmatprep.subr.bf16.mxu0 0
  %1190 = vmatpush2.bf16.msra.mxu0 0
  %1191 = vmatprep.subr.bf16.mxu0 0
  %1192 = vmatpush2.bf16.msra.mxu0 0
  %1193 = vmatprep.subr.bf16.mxu0 0
  %1194 = vmatpush2.bf16.msra.mxu0 0
  %1195 = vmatprep.mubr.bf16.mxu0 0
  %1196 = vmatmul.mubr.bf16.gmra.mxu0 %v1076
  %v1197 = vpop.f32.mrf.mxu0
  %v1198 = vadd.f32 %v1113, %v1197
  %v1199 = vpop.f32.mrf.mxu0
  %v1200 = vpop.f32.mrf.mxu0
  %v1201 = vadd.f32 %v1113, %v1200
  %v1202 = vpop.f32.mrf.mxu0
  %1203 = vmatprep.mubr.bf16.mxu0 0
  %1204 = vmatmul.mubr.bf16.gmra.mxu0 %v1077
  %v1205 = vpop.f32.mrf.mxu0
  %v1206 = vadd.f32 %v1113, %v1205
  %v1207 = vpop.f32.mrf.mxu0
  %v1208 = vpop.f32.mrf.mxu0
  %v1209 = vadd.f32 %v1113, %v1208
  %v1210 = vpop.f32.mrf.mxu0
  %1211 = vmatprep.mubr.bf16.mxu0 0
  %1212 = vmatmul.mubr.bf16.gmra.mxu0 %v1078
  %v1213 = vpop.f32.mrf.mxu0
  %v1214 = vadd.f32 %v1113, %v1213
  %v1215 = vpop.f32.mrf.mxu0
  %v1216 = vpop.f32.mrf.mxu0
  %v1217 = vadd.f32 %v1113, %v1216
  %v1218 = vpop.f32.mrf.mxu0
  %1219 = vmatprep.mubr.bf16.mxu0 0
  %1220 = vmatmul.mubr.bf16.gmra.mxu0 %v1079
  %v1221 = vpop.f32.mrf.mxu0
  %v1222 = vadd.f32 %v1113, %v1221
  %v1223 = vpop.f32.mrf.mxu0
  %v1224 = vpop.f32.mrf.mxu0
  %v1225 = vadd.f32 %v1113, %v1224
  %v1226 = vpop.f32.mrf.mxu0
  %1227 = vmatprep.mubr.bf16.mxu0 0
  %1228 = vmatmul.mubr.bf16.gmra.mxu0 %v1080
  %v1229 = vpop.f32.mrf.mxu0
  %v1230 = vadd.f32 %v1113, %v1229
  %v1231 = vpop.f32.mrf.mxu0
  %v1232 = vpop.f32.mrf.mxu0
  %v1233 = vadd.f32 %v1113, %v1232
  %v1234 = vpop.f32.mrf.mxu0
  %1235 = vmatprep.mubr.bf16.mxu0 0
  %1236 = vmatmul.mubr.bf16.gmra.mxu0 %v1081
  %v1237 = vpop.f32.mrf.mxu0
  %v1238 = vadd.f32 %v1113, %v1237
  %v1239 = vpop.f32.mrf.mxu0
  %v1240 = vpop.f32.mrf.mxu0
  %v1241 = vadd.f32 %v1113, %v1240
  %v1242 = vpop.f32.mrf.mxu0
  %1243 = vmatprep.mubr.bf16.mxu0 0
  %1244 = vmatmul.mubr.bf16.gmra.mxu0 %v1082
  %v1245 = vpop.f32.mrf.mxu0
  %v1246 = vadd.f32 %v1113, %v1245
  %v1247 = vpop.f32.mrf.mxu0
  %v1248 = vpop.f32.mrf.mxu0
  %v1249 = vadd.f32 %v1113, %v1248
  %v1250 = vpop.f32.mrf.mxu0
  %1251 = vmatprep.mubr.bf16.mxu0 0
  %1252 = vmatmul.mubr.bf16.gmra.mxu0 %v1083
  %v1253 = vpop.f32.mrf.mxu0
  %v1254 = vadd.f32 %v1113, %v1253
  %v1255 = vpop.f32.mrf.mxu0
  %v1256 = vpop.f32.mrf.mxu0
  %v1257 = vadd.f32 %v1113, %v1256
  %v1258 = vpop.f32.mrf.mxu0
  %1259 = vmatprep.mubr.bf16.mxu0 0
  %1260 = vmatmul.mubr.bf16.gmra.mxu0 %v1084
  %v1261 = vpop.f32.mrf.mxu0
  %v1262 = vadd.f32 %v1113, %v1261
  %v1263 = vpop.f32.mrf.mxu0
  %v1264 = vpop.f32.mrf.mxu0
  %v1265 = vadd.f32 %v1113, %v1264
  %v1266 = vpop.f32.mrf.mxu0
  %1267 = vmatprep.mubr.bf16.mxu0 0
  %1268 = vmatmul.mubr.bf16.gmra.mxu0 %v1085
  %v1269 = vpop.f32.mrf.mxu0
  %v1270 = vadd.f32 %v1113, %v1269
  %v1271 = vpop.f32.mrf.mxu0
  %v1272 = vpop.f32.mrf.mxu0
  %v1273 = vadd.f32 %v1113, %v1272
  %v1274 = vpop.f32.mrf.mxu0
  %1275 = vmatprep.mubr.bf16.mxu0 0
  %1276 = vmatmul.mubr.bf16.gmra.mxu0 %v1086
  %v1277 = vpop.f32.mrf.mxu0
  %v1278 = vadd.f32 %v1113, %v1277
  %v1279 = vpop.f32.mrf.mxu0
  %v1280 = vpop.f32.mrf.mxu0
  %v1281 = vadd.f32 %v1113, %v1280
  %v1282 = vpop.f32.mrf.mxu0
  %1283 = vmatprep.mubr.bf16.mxu0 0
  %1284 = vmatmul.mubr.bf16.gmra.mxu0 %v1087
  %v1285 = vpop.f32.mrf.mxu0
  %v1286 = vadd.f32 %v1113, %v1285
  %v1287 = vpop.f32.mrf.mxu0
  %v1288 = vpop.f32.mrf.mxu0
  %v1289 = vadd.f32 %v1113, %v1288
  %v1290 = vpop.f32.mrf.mxu0
  %1291 = vmatprep.mubr.bf16.mxu0 0
  %1292 = vmatmul.mubr.bf16.gmra.mxu0 %v1088
  %v1293 = vpop.f32.mrf.mxu0
  %v1294 = vadd.f32 %v1113, %v1293
  %v1295 = vpop.f32.mrf.mxu0
  %v1296 = vpop.f32.mrf.mxu0
  %v1297 = vadd.f32 %v1113, %v1296
  %v1298 = vpop.f32.mrf.mxu0
  %1299 = vmatprep.mubr.bf16.mxu0 0
  %1300 = vmatmul.mubr.bf16.gmra.mxu0 %v1089
  %v1301 = vpop.f32.mrf.mxu0
  %v1302 = vadd.f32 %v1113, %v1301
  %v1303 = vpop.f32.mrf.mxu0
  %v1304 = vpop.f32.mrf.mxu0
  %v1305 = vadd.f32 %v1113, %v1304
  %v1306 = vpop.f32.mrf.mxu0
  %1307 = vmatprep.mubr.bf16.mxu0 0
  %1308 = vmatmul.mubr.bf16.gmra.mxu0 %v1090
  %v1309 = vpop.f32.mrf.mxu0
  %v1310 = vadd.f32 %v1113, %v1309
  %v1311 = vpop.f32.mrf.mxu0
  %v1312 = vpop.f32.mrf.mxu0
  %v1313 = vadd.f32 %v1113, %v1312
  %v1314 = vpop.f32.mrf.mxu0
  %1315 = vmatprep.mubr.bf16.mxu0 0
  %1316 = vmatmul.mubr.bf16.gmra.mxu0 %v1091
  %v1317 = vpop.f32.mrf.mxu0
  %v1318 = vadd.f32 %v1113, %v1317
  %v1319 = vpop.f32.mrf.mxu0
  %v1320 = vpop.f32.mrf.mxu0
  %v1321 = vadd.f32 %v1113, %v1320
  %v1322 = vpop.f32.mrf.mxu0
  %1323 = vdwg.mxu0
  %1324 = vst [vmem:[%s7] sm:$0xff] %v1198
  %1325 = vst [vmem:[%s7 + $0x8] sm:$0xff] %v1201
  %1326 = vst [vmem:[%s7 + $0x10] sm:$0xff] %v1206
  %1327 = vst [vmem:[%s7 + $0x18] sm:$0xff] %v1209
  %1328 = vst [vmem:[%s7 + $0x20] sm:$0xff] %v1214
  %1329 = vst [vmem:[%s7 + $0x28] sm:$0xff] %v1217
  %1330 = vst [vmem:[%s7 + $0x30] sm:$0xff] %v1222
  %1331 = vst [vmem:[%s7 + $0x38] sm:$0xff] %v1225
  %1332 = vst [vmem:[%s7 + $0x40] sm:$0xff] %v1230
  %1333 = vst [vmem:[%s7 + $0x48] sm:$0xff] %v1233
  %1334 = vst [vmem:[%s7 + $0x50] sm:$0xff] %v1238
  %1335 = vst [vmem:[%s7 + $0x58] sm:$0xff] %v1241
  %1336 = vst [vmem:[%s7 + $0x60] sm:$0xff] %v1246
  %1337 = vst [vmem:[%s7 + $0x68] sm:$0xff] %v1249
  %1338 = vst [vmem:[%s7 + $0x70] sm:$0xff] %v1254
  %1339 = vst [vmem:[%s7 + $0x78] sm:$0xff] %v1257
  %1340 = vst [vmem:[%s7 + $0x80] sm:$0xff] %v1262
  %1341 = vst [vmem:[%s7 + $0x88] sm:$0xff] %v1265
  %1342 = vst [vmem:[%s7 + $0x90] sm:$0xff] %v1270
  %1343 = vst [vmem:[%s7 + $0x98] sm:$0xff] %v1273
  %1344 = vst [vmem:[%s7 + $0xa0] sm:$0xff] %v1278
  %1345 = vst [vmem:[%s7 + $0xa8] sm:$0xff] %v1281
  %1346 = vst [vmem:[%s7 + $0xb0] sm:$0xff] %v1286
  %1347 = vst [vmem:[%s7 + $0xb8] sm:$0xff] %v1289
  %1348 = vst [vmem:[%s7 + $0xc0] sm:$0xff] %v1294
  %1349 = vst [vmem:[%s7 + $0xc8] sm:$0xff] %v1297
  %1350 = vst [vmem:[%s7 + $0xd0] sm:$0xff] %v1302
  %1351 = vst [vmem:[%s7 + $0xd8] sm:$0xff] %v1305
  %1352 = vst [vmem:[%s7 + $0xe0] sm:$0xff] %v1310
  %1353 = vst [vmem:[%s7 + $0xe8] sm:$0xff] %v1313
  %1354 = vst [vmem:[%s7 + $0xf0] sm:$0xff] %v1318
  %1355 = vst [vmem:[%s7 + $0xf8] sm:$0xff] %v1321
  // Predicated region
  $region30: #{gcn_embedding.1} parent=0 // pred_check
    _
  $region31: #{gcn_embedding.1} parent=0 // pred_check_branch
    %1357 = sbr.rel (0) target = $region33
  $region32: #{gcn_embedding.1} parent=0 // pred_region
    _
  $region33: #{gcn_embedding.1} parent=0 // pred_fallthru
    _
  // Predicated region
  $region34: #{gcn_embedding.1} parent=0 // pred_check
    _
  $region35: #{gcn_embedding.1} parent=0 // pred_check_branch
    %1359 = sbr.rel (0) target = $region37
  $region36: #{gcn_embedding.1} parent=0 // pred_region
    _
  $region37: #{gcn_embedding.1} parent=0 // pred_fallthru
    _

</llo_original>
